<compile_context>
chip_gen: v7x
topology: tpu7x:2x2x1
jax: 0.10.0
libtpu: 0.0.40
codegen_flags: <defaults>
</compile_context>

<pallas_src>
import functools

import jax
import jax.numpy as jnp
from jax.experimental import pallas as pl
from jax.experimental.pallas import tpu as pltpu


def _round_up(a, b):
    return ((a + b - 1) // b) * b


def _vmem_budget_bytes():
    """Generation-aware VMEM budget (v5e/v6e: 128 MiB, v7x: 64 MiB per TC)."""
    try:
        cap = int(pltpu.get_tpu_info().vmem_capacity_bytes)
    except Exception:
        cap = 0
    if cap <= 0:
        cap = 64 * 1024 * 1024            # conservative fallback (v7x per-core)
    return min(int(cap * 0.7), 96 * 1024 * 1024)


# ---------------------------------------------------------------------------
# Kernel: T shifted (TM x C4p) @ (C4p x Cout_pad) matmuls + bias + LeakyyReLU.
# ---------------------------------------------------------------------------
def _conv_lrelu_kernel(cur_ref, nxt_ref, w_ref, b_ref, o_ref, buf_ref, *,
                       offsets, alpha):
    # cur_ref: (TM, C4p)            bf16  rows [i*TM, (i+1)*TM) of xs_flat
    # nxt_ref: (HB, C4p)            bf16  halo rows [(i+1)*TM, (i+1)*TM + HB)
    # w_ref:   (T,  C4p, Cout_pad)  bf16  per-tap weights   (VMEM resident)
    # b_ref:   (1,  Cout_pad)       f32   bias              (VMEM resident)
    # o_ref:   (TM, Cout_pad)       f32   output tile (lane-dense)
    # buf_ref: (TM+HB, C4p)         f32   staging scratch (f32 so the shifted,
    #                                     sublane-unaligned slices stay cheap)
    tm = o_ref.shape[0]
    buf_ref[0:tm, :] = cur_ref[...].astype(jnp.float32)
    buf_ref[tm:, :] = nxt_ref[...].astype(jnp.float32)

    acc = None
    for t, off in enumerate(offsets):          # static unroll over the taps
        lhs = buf_ref[off:off + tm, :].astype(jnp.bfloat16)
        part = jnp.dot(lhs, w_ref[t], preferred_element_type=jnp.float32)
        acc = part if acc is None else acc + part

    r = acc + b_ref[...]
    o_ref[...] = jnp.where(r > 0, r, alpha * r).astype(o_ref.dtype)


def conv_lrelu(x, weight, bias, *, stride=2, padding=1, alpha=0.2):
    """Forward of ConvLReLU.

    x:      (N, Cin, H, W)   float32, NCHW (PyTorch layout)
    weight: (Cout, Cin, KH, KW)
    bias:   (Cout,)
    returns (N, Cout, Ho, Wo) float32, NCHW
    """
    n, cin, h, w = x.shape
    cout, wcin, khs, kws = weight.shape
    assert wcin == cin and khs == kws, "square kernels only"
    ksize = khs
    # TODO(synk): add a generic fallback path for stride != 2 / odd kernels.
    assert stride == 2 and ksize % 2 == 0, (
        "Pallas ConvLReLU kernel implements the module defaults "
        "(stride=2, even kernel size)")
    p = padding
    k2 = ksize // 2

    ho = (h + 2 * p - ksize) // stride + 1
    wo = (w + 2 * p - ksize) // stride + 1
    hs, ws = ho + k2 - 1, wo + k2 - 1          # over-computed s2d output grid
    hp, wp = 2 * hs, 2 * ws                    # padded input extent (even)

    c4 = 4 * cin                               # s2d channels (2x2 sub-pixels)
    c4p = _round_up(c4, 128)                   # lane-dense contraction dim
    cout_pad = _round_up(cout, 128)            # lane-dense output dim
    n_taps = k2 * k2
    offsets = tuple(dh * ws + dw for dh in range(k2) for dw in range(k2))

    # ---- row tiling (generation-aware) ------------------------------------
    m = n * hs * ws                            # flattened output rows
    hb = _round_up(max(max(offsets), 1), 8)    # halo rows (>= max tap offset)
    budget = _vmem_budget_bytes()
    tm_target = 1024 if budget > 64 * 1024 * 1024 else 512
    tm = _round_up(min(tm_target, _round_up(m, hb)), hb)

    def _vmem_est(tm_):
        by = 2 * tm_ * c4p * 2 + 2 * hb * c4p * 2                 # inputs (2-buf)
        by += 2 * n_taps * c4p * cout_pad * 2 + 2 * cout_pad * 4  # weights/bias
        by += 2 * tm_ * cout_pad * 4                               # output (2-buf)
        by += (tm_ + hb) * c4p * 4                                 # f32 staging
        by += 2 * tm_ * c4p * 2 + 2 * tm_ * cout_pad * 4           # temporaries
        return by

    while _vmem_est(tm) > budget and tm > hb:
        tm = max(hb, _round_up(tm // 2, hb))
    m_total = _round_up(m, tm)
    ratio = tm // hb                            # halo block index multiplier

    # ---- space-to-depth input (~1x data; pads fuse into the same pass) ----
    x_nhwc = x.transpose(0, 2, 3, 1).astype(jnp.bfloat16)          # (N,H,W,Cin)
    xp = jnp.pad(x_nhwc, ((0, 0),
                          (p, max(hp - h - p, 0)),
                          (p, max(wp - w - p, 0)),
                          (0, 0)))[:, :hp, :wp, :]
    xs = xp.reshape(n, hs, 2, ws, 2, cin).transpose(0, 1, 3, 2, 4, 5)
    xs = xs.reshape(n * hs * ws, c4)
    xs = jnp.pad(xs, ((0, m_total + hb - m), (0, c4p - c4)))       # tail + lanes

    # ---- weights / bias: per-tap (4*Cin, Cout) matrices --------------------
    wt = weight.transpose(2, 3, 1, 0)                              # (KH,KW,Ci,Co)
    wt = wt.reshape(k2, 2, k2, 2, cin, cout).transpose(0, 2, 1, 3, 4, 5)
    w2 = wt.reshape(n_taps, c4, cout)
    w2 = jnp.pad(w2, ((0, 0), (0, c4p - c4), (0, cout_pad - cout)))
    w2 = w2.astype(jnp.bfloat16)
    b2 = jnp.pad(bias, (0, cout_pad - cout)).astype(jnp.float32)
    b2 = b2.reshape(1, cout_pad)

    kernel = functools.partial(_conv_lrelu_kernel, offsets=offsets, alpha=alpha)
    cost = pl.CostEstimate(
        flops=2 * m_total * n_taps * c4p * cout_pad,
        transcendentals=0,
        bytes_accessed=((m_total + hb) * c4p * 2
                        + n_taps * c4p * cout_pad * 2
                        + m_total * cout_pad * 4),
    )

    out = pl.pallas_call(
        kernel,
        out_shape=jax.ShapeDtypeStruct((m_total, cout_pad), jnp.float32),
        grid_spec=pltpu.PrefetchScalarGridSpec(
            num_scalar_prefetch=0,
            grid=(m_total // tm,),
            in_specs=[
                pl.BlockSpec((tm, c4p), lambda i: (i, 0)),
                pl.BlockSpec((hb, c4p), lambda i: ((i + 1) * ratio, 0)),
                pl.BlockSpec((n_taps, c4p, cout_pad), lambda i: (0, 0, 0)),
                pl.BlockSpec((1, cout_pad), lambda i: (0, 0)),
            ],
            out_specs=pl.BlockSpec((tm, cout_pad), lambda i: (i, 0)),
            scratch_shapes=[pltpu.VMEM((tm + hb, c4p), jnp.float32)],
        ),
        compiler_params=pltpu.CompilerParams(
            dimension_semantics=("parallel",),
            vmem_limit_bytes=budget,
        ),
        cost_estimate=cost,
    )(xs, xs, w2, b2)

    out = out[:m].reshape(n, hs, ws, cout_pad)[:, :ho, :wo, :cout]
    return out.transpose(0, 3, 1, 2)                               # NHWC -> NCHW


# ---------------------------------------------------------------------------
# Deterministic parameter init (mimics nn.Conv2d default kaiming-uniform)
# ---------------------------------------------------------------------------
def init_params(key, in_channels, out_channels, ksize):
    fan_in = in_channels * ksize * ksize
    bound = 1.0 / jnp.sqrt(fan_in)
    kw_, kb_ = jax.random.split(key)
    weight = jax.random.uniform(
        kw_, (out_channels, in_channels, ksize, ksize),
        minval=-bound, maxval=bound, dtype=jnp.float32)
    bias = jax.random.uniform(
        kb_, (out_channels,), minval=-bound, maxval=bound, dtype=jnp.float32)
    return weight, bias


if __name__ == "__main__":
    key = jax.random.PRNGKey(0)
    kx, kp = jax.random.split(key)

    N, Cin, H, W = 2, 4, 16, 16
    Cout, K, stride, pad, alpha = 8, 4, 2, 1, 0.2

    x = jax.random.normal(kx, (N, Cin, H, W), dtype=jnp.float32)
    weight, bias = init_params(kp, Cin, Cout, K)

    fwd = jax.jit(functools.partial(conv_lrelu, stride=stride, padding=pad,
                                    alpha=alpha))
    y = jax.block_until_ready(fwd(x, weight, bias))

    Ho = (H + 2 * pad - K) // stride + 1
    Wo = (W + 2 * pad - K) // stride + 1
    assert y.shape == (N, Cout, Ho, Wo)

    # Reference 1: same bf16-quantized operands, f32 accumulation -> tight
    # check of the kernel's own arithmetic (matmul + bias + LeakyReLU).
    x_q = x.astype(jnp.bfloat16).astype(jnp.float32)
    w_q = weight.astype(jnp.bfloat16).astype(jnp.float32)
    ref = jax.lax.conv_general_dilated(
        x_q, w_q, window_strides=(stride, stride),
        padding=((pad, pad), (pad, pad)),
        dimension_numbers=("NCHW", "OIHW", "NCHW"))
    ref = ref + bias[None, :, None, None]
    ref = jnp.where(ref > 0, ref, alpha * ref)
    assert jnp.allclose(y, ref, atol=2e-3, rtol=2e-3)

    # Reference 2: full-f32 operands -> loose bound on bf16 quantization error.
    ref32 = jax.lax.conv_general_dilated(
        x, weight, window_strides=(stride, stride),
        padding=((pad, pad), (pad, pad)),
        dimension_numbers=("NCHW", "OIHW", "NCHW"))
    ref32 = ref32 + bias[None, :, None, None]
    ref32 = jnp.where(ref32 > 0, ref32, alpha * ref32)
    assert jnp.allclose(y, ref32, atol=1e-1, rtol=1e-1)

    print("KERNEL_OK")
</pallas_src>

<mosaic_0001>
module attributes {stable_mosaic.version = 11 : i64} {
  func.func @_conv_lrelu_kernel(%arg0: i32, %arg1: memref<176x128xbf16, #tpu.memory_space<vmem>>, %arg2: memref<16x128xbf16, #tpu.memory_space<vmem>>, %arg3: memref<4x128x128xbf16, #tpu.memory_space<vmem>>, %arg4: memref<1x128xf32, #tpu.memory_space<vmem>>, %arg5: memref<176x128xf32, #tpu.memory_space<vmem>>, %arg6: memref<192x128xf32, #tpu.memory_space<vmem>>) attributes {dimension_semantics = [#tpu.dimension_semantics<parallel>], iteration_bounds = array<i64: 1>, scalar_prefetch = 0 : i64, scratch_operands = 1 : i64, tpu.core_type = #tpu.core_type<tc>, window_params = [{transform_indices = @transform_0, window_bounds = array<i64: 176, 128>}, {transform_indices = @transform_1, window_bounds = array<i64: 16, 128>}, {pipeline_mode = #tpu.pipeline_mode<synchronous>, transform_indices = @transform_2, window_bounds = array<i64: 4, 128, 128>}, {pipeline_mode = #tpu.pipeline_mode<synchronous>, transform_indices = @transform_3, window_bounds = array<i64: 1, 128>}, {transform_indices = @transform_4, window_bounds = array<i64: 176, 128>}]} {
    %c0 = arith.constant 0 : index
    %c0_0 = arith.constant 0 : index
    %0 = vector.load %arg1[%c0, %c0_0] : memref<176x128xbf16, #tpu.memory_space<vmem>>, vector<176x128xbf16>
    %1 = arith.extf %0 : vector<176x128xbf16> to vector<176x128xf32>
    %c0_1 = arith.constant 0 : index
    %c0_2 = arith.constant 0 : index
    %2 = vector.load %arg6[%c0_1, %c0_2] : memref<192x128xf32, #tpu.memory_space<vmem>>, vector<176x128xf32>
    tpu.vector_store %arg6[%c0_1, %c0_2], %1 {strides = array<i32>} : memref<192x128xf32, #tpu.memory_space<vmem>>, vector<176x128xf32>,
    %c0_3 = arith.constant 0 : index
    %c0_4 = arith.constant 0 : index
    %3 = vector.load %arg2[%c0_3, %c0_4] : memref<16x128xbf16, #tpu.memory_space<vmem>>, vector<16x128xbf16>
    %4 = arith.extf %3 : vector<16x128xbf16> to vector<16x128xf32>
    %c176 = arith.constant 176 : index
    %c0_5 = arith.constant 0 : index
    %5 = vector.load %arg6[%c176, %c0_5] : memref<192x128xf32, #tpu.memory_space<vmem>>, vector<16x128xf32>
    tpu.vector_store %arg6[%c176, %c0_5], %4 {strides = array<i32>} : memref<192x128xf32, #tpu.memory_space<vmem>>, vector<16x128xf32>,
    %c0_6 = arith.constant 0 : index
    %c0_7 = arith.constant 0 : index
    %6 = vector.load %arg6[%c0_6, %c0_7] : memref<192x128xf32, #tpu.memory_space<vmem>>, vector<176x128xf32>
    %7 = arith.truncf %6 : vector<176x128xf32> to vector<176x128xbf16>
    %c0_8 = arith.constant 0 : index
    %c0_9 = arith.constant 0 : index
    %c0_10 = arith.constant 0 : index
    %8 = vector.load %arg3[%c0_8, %c0_9, %c0_10] : memref<4x128x128xbf16, #tpu.memory_space<vmem>>, vector<1x128x128xbf16>
    %9 = vector.shape_cast %8 : vector<1x128x128xbf16> to vector<128x128xbf16>
    %cst = arith.constant dense<0.000000e+00> : vector<176x128xf32>
    %10 = tpu.matmul %7, %9, %cst {dimension_numbers = #tpu.dot_dimension_numbers<[1], [0], [0], [1], [0, 0, 1, 1], [], []>} : vector<176x128xbf16>, vector<128x128xbf16>, vector<176x128xf32> -> vector<176x128xf32>
    %c1 = arith.constant 1 : index
    %c0_11 = arith.constant 0 : index
    %11 = vector.load %arg6[%c1, %c0_11] : memref<192x128xf32, #tpu.memory_space<vmem>>, vector<176x128xf32>
    %12 = arith.truncf %11 : vector<176x128xf32> to vector<176x128xbf16>
    %c1_12 = arith.constant 1 : index
    %c0_13 = arith.constant 0 : index
    %c0_14 = arith.constant 0 : index
    %13 = vector.load %arg3[%c1_12, %c0_13, %c0_14] : memref<4x128x128xbf16, #tpu.memory_space<vmem>>, vector<1x128x128xbf16>
    %14 = vector.shape_cast %13 : vector<1x128x128xbf16> to vector<128x128xbf16>
    %cst_15 = arith.constant dense<0.000000e+00> : vector<176x128xf32>
    %15 = tpu.matmul %12, %14, %cst_15 {dimension_numbers = #tpu.dot_dimension_numbers<[1], [0], [0], [1], [0, 0, 1, 1], [], []>} : vector<176x128xbf16>, vector<128x128xbf16>, vector<176x128xf32> -> vector<176x128xf32>
    %16 = arith.addf %10, %15 : vector<176x128xf32>
    %c9 = arith.constant 9 : index
    %c0_16 = arith.constant 0 : index
    %17 = vector.load %arg6[%c9, %c0_16] : memref<192x128xf32, #tpu.memory_space<vmem>>, vector<176x128xf32>
    %18 = arith.truncf %17 : vector<176x128xf32> to vector<176x128xbf16>
    %c2 = arith.constant 2 : index
    %c0_17 = arith.constant 0 : index
    %c0_18 = arith.constant 0 : index
    %19 = vector.load %arg3[%c2, %c0_17, %c0_18] : memref<4x128x128xbf16, #tpu.memory_space<vmem>>, vector<1x128x128xbf16>
    %20 = vector.shape_cast %19 : vector<1x128x128xbf16> to vector<128x128xbf16>
    %cst_19 = arith.constant dense<0.000000e+00> : vector<176x128xf32>
    %21 = tpu.matmul %18, %20, %cst_19 {dimension_numbers = #tpu.dot_dimension_numbers<[1], [0], [0], [1], [0, 0, 1, 1], [], []>} : vector<176x128xbf16>, vector<128x128xbf16>, vector<176x128xf32> -> vector<176x128xf32>
    %22 = arith.addf %16, %21 : vector<176x128xf32>
    %c10 = arith.constant 10 : index
    %c0_20 = arith.constant 0 : index
    %23 = vector.load %arg6[%c10, %c0_20] : memref<192x128xf32, #tpu.memory_space<vmem>>, vector<176x128xf32>
    %24 = arith.truncf %23 : vector<176x128xf32> to vector<176x128xbf16>
    %c3 = arith.constant 3 : index
    %c0_21 = arith.constant 0 : index
    %c0_22 = arith.constant 0 : index
    %25 = vector.load %arg3[%c3, %c0_21, %c0_22] : memref<4x128x128xbf16, #tpu.memory_space<vmem>>, vector<1x128x128xbf16>
    %26 = vector.shape_cast %25 : vector<1x128x128xbf16> to vector<128x128xbf16>
    %cst_23 = arith.constant dense<0.000000e+00> : vector<176x128xf32>
    %27 = tpu.matmul %24, %26, %cst_23 {dimension_numbers = #tpu.dot_dimension_numbers<[1], [0], [0], [1], [0, 0, 1, 1], [], []>} : vector<176x128xbf16>, vector<128x128xbf16>, vector<176x128xf32> -> vector<176x128xf32>
    %28 = arith.addf %22, %27 : vector<176x128xf32>
    %c0_24 = arith.constant 0 : index
    %c0_25 = arith.constant 0 : index
    %29 = vector.load %arg4[%c0_24, %c0_25] : memref<1x128xf32, #tpu.memory_space<vmem>>, vector<1x128xf32>
    %30 = vector.broadcast %29 : vector<1x128xf32> to vector<176x128xf32>
    %31 = arith.addf %28, %30 : vector<176x128xf32>
    %cst_26 = arith.constant 0.000000e+00 : f32
    %32 = vector.broadcast %cst_26 : f32 to vector<176x128xf32>
    %33 = arith.cmpf ogt, %31, %32 : vector<176x128xf32>
    %cst_27 = arith.constant 2.000000e-01 : f32
    %34 = vector.broadcast %cst_27 : f32 to vector<176x128xf32>
    %35 = arith.mulf %34, %31 : vector<176x128xf32>
    %36 = arith.select %33, %31, %35 : vector<176x128xi1>, vector<176x128xf32>
    %c0_28 = arith.constant 0 : index
    %c0_29 = arith.constant 0 : index
    %37 = vector.load %arg5[%c0_28, %c0_29] : memref<176x128xf32, #tpu.memory_space<vmem>>, vector<176x128xf32>
    tpu.vector_store %arg5[%c0_28, %c0_29], %36 {strides = array<i32>} : memref<176x128xf32, #tpu.memory_space<vmem>>, vector<176x128xf32>,
    return
  }
  func.func @transform_0(%arg0: i32) -> (i32, i32) {
    %c0_i32 = arith.constant 0 : i32
    %c0_i32_0 = arith.constant 0 : i32
    return %arg0, %c0_i32 : i32, i32
  }
  func.func @transform_1(%arg0: i32) -> (i32, i32) {
    %c1_i32 = arith.constant 1 : i32
    %0 = arith.addi %arg0, %c1_i32 : i32
    %c11_i32 = arith.constant 11 : i32
    %1 = arith.muli %0, %c11_i32 : i32
    %c0_i32 = arith.constant 0 : i32
    %c0_i32_0 = arith.constant 0 : i32
    return %1, %c0_i32 : i32, i32
  }
  func.func @transform_2(%arg0: i32) -> (i32, i32, i32) {
    %c0_i32 = arith.constant 0 : i32
    %c0_i32_0 = arith.constant 0 : i32
    %c0_i32_1 = arith.constant 0 : i32
    %c0_i32_2 = arith.constant 0 : i32
    return %c0_i32, %c0_i32_0, %c0_i32_1 : i32, i32, i32
  }
  func.func @transform_3(%arg0: i32) -> (i32, i32) {
    %c0_i32 = arith.constant 0 : i32
    %c0_i32_0 = arith.constant 0 : i32
    %c0_i32_1 = arith.constant 0 : i32
    return %c0_i32, %c0_i32_0 : i32, i32
  }
  func.func @transform_4(%arg0: i32) -> (i32, i32) {
    %c0_i32 = arith.constant 0 : i32
    %c0_i32_0 = arith.constant 0 : i32
    return %arg0, %c0_i32 : i32, i32
  }
}

</mosaic_0001>

<llo_original>
// kernel: conv_lrelu.1
$region0: #{conv_lrelu.1}
  #allocation0 [shape = 'u32[]', space=smem, size = 0x4, offset = 0x4, fixed_abs, tag = 'smem constant byte address 0x4 - core index']
  #allocation1 [shape = 'u32[144,128]{1,0:T(1,128)}', space=vmem, size = 0x12000, scoped, tag = 'internal scratch']
  #allocation2 [shape = 'f32[192,128]{1,0:T(8,128)}', space=vmem, size = 0x18000, scoped, tag = 'scratch operand']
  %s0 = inlined_call_operand.vmem [shape: bf16[192,128], index: 0, kind: input, shape index: {}, may-alias: {0,1}]
  %s1 = inlined_call_operand.vmem [shape: bf16[192,128], index: 1, kind: input, shape index: {}, may-alias: {0,1}]
  %s2 = inlined_call_operand.vmem [shape: bf16[4,128,128], index: 2, kind: input, shape index: {}]
  %s3 = inlined_call_operand.vmem [shape: f32[1,128], index: 3, kind: input, shape index: {}]
  %s4 = inlined_call_operand.vmem [shape: f32[176,128], index: 4, kind: output, shape index: {}]
  %s5 = sld [smem:[#allocation0]]
  $region26: #{conv_lrelu.1} parent=0
    _
  %s7 = ssub.s32 1, %s5
  %s8 = scalar_select 0, %s7, %s5
  // Predicated region
  $region2: #{conv_lrelu.1} parent=0 // pred_check
    _
  $region3: #{conv_lrelu.1} parent=0 // pred_check_branch
    %10 = sbr.rel (0) target = $region5
  $region4: #{conv_lrelu.1} parent=0 // pred_region
    _
  $region5: #{conv_lrelu.1} parent=0 // pred_fallthru
    _
  // Predicated region
  $region6: #{conv_lrelu.1} parent=0 // pred_check
    _
  $region7: #{conv_lrelu.1} parent=0 // pred_check_branch
    %12 = sbr.rel (0) target = $region9
  $region8: #{conv_lrelu.1} parent=0 // pred_region
    %s13 = sadd.s32 0, 1
    %s14 = smul.u32 %s13, 11
    %s15 = smul.u32 2, %s14
    %p16 = scmp.lt.s32.totalorder %s15, 23
    %s17 = scalar_select %p16, %s15, 23
    %s18 = smul.addr %s17, 4
    %s19 = scalar_lea.vmem %s1, %s18
    %s20 = sadd.s32 0, 1
    %s21 = smul.u32 %s20, 11
    %s22 = smul.u32 2, %s21
  $region9: #{conv_lrelu.1} parent=0 // pred_fallthru
    _
  // Predicated region
  $region10: #{conv_lrelu.1} parent=0 // pred_check
    _
  $region11: #{conv_lrelu.1} parent=0 // pred_check_branch
    %24 = sbr.rel (0) target = $region13
  $region12: #{conv_lrelu.1} parent=0 // pred_region
    _
  $region13: #{conv_lrelu.1} parent=0 // pred_fallthru
    _
  // Predicated region
  $region14: #{conv_lrelu.1} parent=0 // pred_check
    _
  $region15: #{conv_lrelu.1} parent=0 // pred_check_branch
    %26 = sbr.rel (0) target = $region17
  $region16: #{conv_lrelu.1} parent=0 // pred_region
    _
  $region17: #{conv_lrelu.1} parent=0 // pred_fallthru
    _
  %s27 = sadd.s32 0, 1
  %s28 = smul.u32 %s27, 11
  %s29 = smul.u32 2, %s28
  %p30 = scmp.lt.s32.totalorder %s29, 23
  %s31 = scalar_select %p30, %s29, 23
  %s32 = smul.addr %s31, 4
  %s33 = scalar_lea.vmem %s1, %s32
  %s34 = sadd.s32 0, 1
  %s35 = smul.u32 %s34, 11
  %s36 = smul.u32 2, %s35
  %p37 = scmp.lt.s32.totalorder %s36, 23
  %s38 = scalar_select %p37, %s36, 23
  %s39 = smul.addr %s38, 4
  %s40 = scalar_lea.vmem %s1, %s39
  %s41 = sadd.s32 0, 1
  %s42 = smul.u32 %s41, 11
  %s43 = smul.u32 2, %s42
  %v45 = vld [vmem:[%s0] sm:$0xf]
  %v46 = vld [vmem:[%s0 + $0x4] sm:$0xf]
  %v47 = vld [vmem:[%s0 + $0x8] sm:$0xf]
  %v48 = vld [vmem:[%s0 + $0xc] sm:$0xf]
  %v49 = vld [vmem:[%s0 + $0x10] sm:$0xf]
  %v50 = vld [vmem:[%s0 + $0x14] sm:$0xf]
  %v51 = vld [vmem:[%s0 + $0x18] sm:$0xf]
  %v52 = vld [vmem:[%s0 + $0x1c] sm:$0xf]
  %v53 = vld [vmem:[%s0 + $0x20] sm:$0xf]
  %v54 = vld [vmem:[%s0 + $0x24] sm:$0xf]
  %v55 = vld [vmem:[%s0 + $0x28] sm:$0xf]
  %v56 = vld [vmem:[%s0 + $0x2c] sm:$0xf]
  %v57 = vld [vmem:[%s0 + $0x30] sm:$0xf]
  %v58 = vld [vmem:[%s0 + $0x34] sm:$0xf]
  %v59 = vld [vmem:[%s0 + $0x38] sm:$0xf]
  %v60 = vld [vmem:[%s0 + $0x3c] sm:$0xf]
  %v61 = vld [vmem:[%s0 + $0x40] sm:$0xf]
  %v62 = vld [vmem:[%s0 + $0x44] sm:$0xf]
  %v63 = vld [vmem:[%s0 + $0x48] sm:$0xf]
  %v64 = vld [vmem:[%s0 + $0x4c] sm:$0xf]
  %v65 = vld [vmem:[%s0 + $0x50] sm:$0xf]
  %v66 = vld [vmem:[%s0 + $0x54] sm:$0xf]
  %v67 = vunpack.c.l.bf16 %v45
  %v68 = vunpack.c.l.bf16 %v46
  %v69 = vunpack.c.l.bf16 %v47
  %v70 = vunpack.c.l.bf16 %v48
  %v71 = vunpack.c.l.bf16 %v49
  %v72 = vunpack.c.l.bf16 %v50
  %v73 = vunpack.c.l.bf16 %v51
  %v74 = vunpack.c.l.bf16 %v52
  %v75 = vunpack.c.l.bf16 %v53
  %v76 = vunpack.c.l.bf16 %v54
  %v77 = vunpack.c.l.bf16 %v55
  %v78 = vunpack.c.l.bf16 %v56
  %v79 = vunpack.c.l.bf16 %v57
  %v80 = vunpack.c.l.bf16 %v58
  %v81 = vunpack.c.l.bf16 %v59
  %v82 = vunpack.c.l.bf16 %v60
  %v83 = vunpack.c.l.bf16 %v61
  %v84 = vunpack.c.l.bf16 %v62
  %v85 = vunpack.c.l.bf16 %v63
  %v86 = vunpack.c.l.bf16 %v64
  %v87 = vunpack.c.l.bf16 %v65
  %v88 = vunpack.c.l.bf16 %v66
  %89 = vst [vmem:[#allocation2] sm:$0xff] %v67
  %90 = vst [vmem:[#allocation2 + $0x8] sm:$0xff] %v68
  %91 = vst [vmem:[#allocation2 + $0x10] sm:$0xff] %v69
  %92 = vst [vmem:[#allocation2 + $0x18] sm:$0xff] %v70
  %93 = vst [vmem:[#allocation2 + $0x20] sm:$0xff] %v71
  %94 = vst [vmem:[#allocation2 + $0x28] sm:$0xff] %v72
  %95 = vst [vmem:[#allocation2 + $0x30] sm:$0xff] %v73
  %96 = vst [vmem:[#allocation2 + $0x38] sm:$0xff] %v74
  %97 = vst [vmem:[#allocation2 + $0x40] sm:$0xff] %v75
  %98 = vst [vmem:[#allocation2 + $0x48] sm:$0xff] %v76
  %99 = vst [vmem:[#allocation2 + $0x50] sm:$0xff] %v77
  %100 = vst [vmem:[#allocation2 + $0x58] sm:$0xff] %v78
  %101 = vst [vmem:[#allocation2 + $0x60] sm:$0xff] %v79
  %102 = vst [vmem:[#allocation2 + $0x68] sm:$0xff] %v80
  %103 = vst [vmem:[#allocation2 + $0x70] sm:$0xff] %v81
  %104 = vst [vmem:[#allocation2 + $0x78] sm:$0xff] %v82
  %105 = vst [vmem:[#allocation2 + $0x80] sm:$0xff] %v83
  %106 = vst [vmem:[#allocation2 + $0x88] sm:$0xff] %v84
  %107 = vst [vmem:[#allocation2 + $0x90] sm:$0xff] %v85
  %108 = vst [vmem:[#allocation2 + $0x98] sm:$0xff] %v86
  %109 = vst [vmem:[#allocation2 + $0xa0] sm:$0xff] %v87
  %110 = vst [vmem:[#allocation2 + $0xa8] sm:$0xff] %v88
  %v111 = vld [vmem:[%s40] sm:$0xf]
  %v112 = vld [vmem:[%s40 + $0x4] sm:$0xf]
  %v113 = vunpack.c.l.bf16 %v111
  %v114 = vunpack.c.l.bf16 %v112
  %115 = vst [vmem:[#allocation2 + $0xb0] sm:$0xff] %v113
  %116 = vst [vmem:[#allocation2 + $0xb8] sm:$0xff] %v114
  %v117 = vld [vmem:[#allocation2] sm:$0xff]
  %v118 = vld [vmem:[#allocation2 + $0x8] sm:$0xff]
  %v119 = vld [vmem:[#allocation2 + $0x10] sm:$0xff]
  %v120 = vld [vmem:[#allocation2 + $0x18] sm:$0xff]
  %v121 = vld [vmem:[#allocation2 + $0x20] sm:$0xff]
  %v122 = vld [vmem:[#allocation2 + $0x28] sm:$0xff]
  %v123 = vld [vmem:[#allocation2 + $0x30] sm:$0xff]
  %v124 = vld [vmem:[#allocation2 + $0x38] sm:$0xff]
  %v125 = vld [vmem:[#allocation2 + $0x40] sm:$0xff]
  %v126 = vld [vmem:[#allocation2 + $0x48] sm:$0xff]
  %v127 = vld [vmem:[#allocation2 + $0x50] sm:$0xff]
  %v128 = vld [vmem:[#allocation2 + $0x58] sm:$0xff]
  %v129 = vld [vmem:[#allocation2 + $0x60] sm:$0xff]
  %v130 = vld [vmem:[#allocation2 + $0x68] sm:$0xff]
  %v131 = vld [vmem:[#allocation2 + $0x70] sm:$0xff]
  %v132 = vld [vmem:[#allocation2 + $0x78] sm:$0xff]
  %v133 = vld [vmem:[#allocation2 + $0x80] sm:$0xff]
  %v134 = vld [vmem:[#allocation2 + $0x88] sm:$0xff]
  %v135 = vld [vmem:[#allocation2 + $0x90] sm:$0xff]
  %v136 = vld [vmem:[#allocation2 + $0x98] sm:$0xff]
  %v137 = vld [vmem:[#allocation2 + $0xa0] sm:$0xff]
  %v138 = vld [vmem:[#allocation2 + $0xa8] sm:$0xff]
  %v139 = vpack.c.bf16 %v118, %v117
  %v140 = vpack.c.bf16 %v120, %v119
  %v141 = vpack.c.bf16 %v122, %v121
  %v142 = vpack.c.bf16 %v124, %v123
  %v143 = vpack.c.bf16 %v126, %v125
  %v144 = vpack.c.bf16 %v128, %v127
  %v145 = vpack.c.bf16 %v130, %v129
  %v146 = vpack.c.bf16 %v132, %v131
  %v147 = vpack.c.bf16 %v134, %v133
  %v148 = vpack.c.bf16 %v136, %v135
  %v149 = vpack.c.bf16 %v138, %v137
  %v150 = vld [vmem:[%s2] sm:$0xf]
  %v151 = vld [vmem:[%s2 + $0x4] sm:$0xf]
  %v152 = vld [vmem:[%s2 + $0x8] sm:$0xf]
  %v153 = vld [vmem:[%s2 + $0xc] sm:$0xf]
  %v154 = vld [vmem:[%s2 + $0x10] sm:$0xf]
  %v155 = vld [vmem:[%s2 + $0x14] sm:$0xf]
  %v156 = vld [vmem:[%s2 + $0x18] sm:$0xf]
  %v157 = vld [vmem:[%s2 + $0x1c] sm:$0xf]
  %v158 = vld [vmem:[%s2 + $0x20] sm:$0xf]
  %v159 = vld [vmem:[%s2 + $0x24] sm:$0xf]
  %v160 = vld [vmem:[%s2 + $0x28] sm:$0xf]
  %v161 = vld [vmem:[%s2 + $0x2c] sm:$0xf]
  %v162 = vld [vmem:[%s2 + $0x30] sm:$0xf]
  %v163 = vld [vmem:[%s2 + $0x34] sm:$0xf]
  %v164 = vld [vmem:[%s2 + $0x38] sm:$0xf]
  %v165 = vld [vmem:[%s2 + $0x3c] sm:$0xf]
  %v166 = vld [vmem:[#allocation2 + $0x1] sm:$0xff]
  %v167 = vld [vmem:[#allocation2 + $0x9] sm:$0xff]
  %v168 = vld [vmem:[#allocation2 + $0x11] sm:$0xff]
  %v169 = vld [vmem:[#allocation2 + $0x19] sm:$0xff]
  %v170 = vld [vmem:[#allocation2 + $0x21] sm:$0xff]
  %v171 = vld [vmem:[#allocation2 + $0x29] sm:$0xff]
  %v172 = vld [vmem:[#allocation2 + $0x31] sm:$0xff]
  %v173 = vld [vmem:[#allocation2 + $0x39] sm:$0xff]
  %v174 = vld [vmem:[#allocation2 + $0x41] sm:$0xff]
  %v175 = vld [vmem:[#allocation2 + $0x49] sm:$0xff]
  %v176 = vld [vmem:[#allocation2 + $0x51] sm:$0xff]
  %v177 = vld [vmem:[#allocation2 + $0x59] sm:$0xff]
  %v178 = vld [vmem:[#allocation2 + $0x61] sm:$0xff]
  %v179 = vld [vmem:[#allocation2 + $0x69] sm:$0xff]
  %v180 = vld [vmem:[#allocation2 + $0x71] sm:$0xff]
  %v181 = vld [vmem:[#allocation2 + $0x79] sm:$0xff]
  %v182 = vld [vmem:[#allocation2 + $0x81] sm:$0xff]
  %v183 = vld [vmem:[#allocation2 + $0x89] sm:$0xff]
  %v184 = vld [vmem:[#allocation2 + $0x91] sm:$0xff]
  %v185 = vld [vmem:[#allocation2 + $0x99] sm:$0xff]
  %v186 = vld [vmem:[#allocation2 + $0xa1] sm:$0xff]
  %v187 = vld [vmem:[#allocation2 + $0xa9] sm:$0xff]
  %v188 = vpack.c.bf16 %v167, %v166
  %v189 = vpack.c.bf16 %v169, %v168
  %v190 = vpack.c.bf16 %v171, %v170
  %v191 = vpack.c.bf16 %v173, %v172
  %v192 = vpack.c.bf16 %v175, %v174
  %v193 = vpack.c.bf16 %v177, %v176
  %v194 = vpack.c.bf16 %v179, %v178
  %v195 = vpack.c.bf16 %v181, %v180
  %v196 = vpack.c.bf16 %v183, %v182
  %v197 = vpack.c.bf16 %v185, %v184
  %v198 = vpack.c.bf16 %v187, %v186
  %s199 = scalar_lea.vmem %s2, 64
  %v200 = vld [vmem:[%s199] sm:$0xf]
  %v201 = vld [vmem:[%s199 + $0x4] sm:$0xf]
  %v202 = vld [vmem:[%s199 + $0x8] sm:$0xf]
  %v203 = vld [vmem:[%s199 + $0xc] sm:$0xf]
  %v204 = vld [vmem:[%s199 + $0x10] sm:$0xf]
  %v205 = vld [vmem:[%s199 + $0x14] sm:$0xf]
  %v206 = vld [vmem:[%s199 + $0x18] sm:$0xf]
  %v207 = vld [vmem:[%s199 + $0x1c] sm:$0xf]
  %v208 = vld [vmem:[%s199 + $0x20] sm:$0xf]
  %v209 = vld [vmem:[%s199 + $0x24] sm:$0xf]
  %v210 = vld [vmem:[%s199 + $0x28] sm:$0xf]
  %v211 = vld [vmem:[%s199 + $0x2c] sm:$0xf]
  %v212 = vld [vmem:[%s199 + $0x30] sm:$0xf]
  %v213 = vld [vmem:[%s199 + $0x34] sm:$0xf]
  %v214 = vld [vmem:[%s199 + $0x38] sm:$0xf]
  %v215 = vld [vmem:[%s199 + $0x3c] sm:$0xf]
  %v232 = vunpack.c.l.b16 %v200
  %v233 = vunpack.c.l.b16 %v201
  %v234 = vunpack.c.l.b16 %v202
  %v235 = vunpack.c.l.b16 %v203
  %v236 = vunpack.c.l.b16 %v204
  %v237 = vunpack.c.l.b16 %v205
  %v238 = vunpack.c.l.b16 %v206
  %v239 = vunpack.c.l.b16 %v207
  %v240 = vunpack.c.l.b16 %v208
  %v241 = vunpack.c.l.b16 %v209
  %v242 = vunpack.c.l.b16 %v210
  %v243 = vunpack.c.l.b16 %v211
  %v244 = vunpack.c.l.b16 %v212
  %v245 = vunpack.c.l.b16 %v213
  %v246 = vunpack.c.l.b16 %v214
  %v247 = vunpack.c.l.b16 %v215
  %v248 = vpack.c.b16 %v233, %v232
  %v249 = vpack.c.b16 %v235, %v234
  %v250 = vpack.c.b16 %v237, %v236
  %v251 = vpack.c.b16 %v239, %v238
  %v252 = vpack.c.b16 %v241, %v240
  %v253 = vpack.c.b16 %v243, %v242
  %v254 = vpack.c.b16 %v245, %v244
  %v255 = vpack.c.b16 %v247, %v246
  %264 = vmatprep.subr.bf16.mxu0 0
  %265 = vmatpush1.bf16.msra.mxu0 %v248
  %266 = vmatprep.subr.bf16.mxu0 0
  %267 = vmatpush1.bf16.msra.mxu0 %v249
  %268 = vmatprep.subr.bf16.mxu0 0
  %269 = vmatpush1.bf16.msra.mxu0 %v250
  %270 = vmatprep.subr.bf16.mxu0 0
  %271 = vmatpush1.bf16.msra.mxu0 %v251
  %272 = vmatprep.subr.bf16.mxu0 0
  %273 = vmatpush1.bf16.msra.mxu0 %v252
  %274 = vmatprep.subr.bf16.mxu0 0
  %275 = vmatpush1.bf16.msra.mxu0 %v253
  %276 = vmatprep.subr.bf16.mxu0 0
  %277 = vmatpush1.bf16.msra.mxu0 %v254
  %278 = vmatprep.subr.bf16.mxu0 0
  %279 = vmatpush1.bf16.msra.mxu0 %v255
  %280 = vmatprep.subr.bf16.mxu0 0
  %281 = vmatpush1.bf16.msra.mxu0 0
  %282 = vmatprep.subr.bf16.mxu0 0
  %283 = vmatpush1.bf16.msra.mxu0 0
  %284 = vmatprep.subr.bf16.mxu0 0
  %285 = vmatpush1.bf16.msra.mxu0 0
  %286 = vmatprep.subr.bf16.mxu0 0
  %287 = vmatpush1.bf16.msra.mxu0 0
  %288 = vmatprep.subr.bf16.mxu0 0
  %289 = vmatpush1.bf16.msra.mxu0 0
  %290 = vmatprep.subr.bf16.mxu0 0
  %291 = vmatpush1.bf16.msra.mxu0 0
  %292 = vmatprep.subr.bf16.mxu0 0
  %293 = vmatpush1.bf16.msra.mxu0 0
  %294 = vmatprep.subr.bf16.mxu0 0
  %295 = vmatpush1.bf16.msra.mxu0 0
  %296 = vmatprep.mubr.bf16.mxu0 0
  %297 = vmatmul.mubr.bf16.gmra.mrb[0].mxu0 %v188
  %v298 = vpop.f32.mrb[0].mxu0
  %v299 = vadd.f32 0.0, %v298
  %v300 = vpop.f32.mrb[0].mxu0
  %v301 = vpop.f32.mrb[0].mxu0
  %v302 = vadd.f32 0.0, %v301
  %v303 = vpop.f32.mrb[0].mxu0
  %304 = vmatprep.mubr.bf16.mxu0 0
  %305 = vmatmul.mubr.bf16.gmra.mrb[0].mxu0 %v189
  %v306 = vpop.f32.mrb[0].mxu0
  %v307 = vadd.f32 0.0, %v306
  %v308 = vpop.f32.mrb[0].mxu0
  %v309 = vpop.f32.mrb[0].mxu0
  %v310 = vadd.f32 0.0, %v309
  %v311 = vpop.f32.mrb[0].mxu0
  %312 = vmatprep.mubr.bf16.mxu0 0
  %313 = vmatmul.mubr.bf16.gmra.mrb[0].mxu0 %v190
  %v314 = vpop.f32.mrb[0].mxu0
  %v315 = vadd.f32 0.0, %v314
  %v316 = vpop.f32.mrb[0].mxu0
  %v317 = vpop.f32.mrb[0].mxu0
  %v318 = vadd.f32 0.0, %v317
  %v319 = vpop.f32.mrb[0].mxu0
  %320 = vmatprep.mubr.bf16.mxu0 0
  %321 = vmatmul.mubr.bf16.gmra.mrb[0].mxu0 %v191
  %v322 = vpop.f32.mrb[0].mxu0
  %v323 = vadd.f32 0.0, %v322
  %v324 = vpop.f32.mrb[0].mxu0
  %v325 = vpop.f32.mrb[0].mxu0
  %v326 = vadd.f32 0.0, %v325
  %v327 = vpop.f32.mrb[0].mxu0
  %328 = vmatprep.mubr.bf16.mxu0 0
  %329 = vmatmul.mubr.bf16.gmra.mrb[0].mxu0 %v192
  %v330 = vpop.f32.mrb[0].mxu0
  %v331 = vadd.f32 0.0, %v330
  %v332 = vpop.f32.mrb[0].mxu0
  %v333 = vpop.f32.mrb[0].mxu0
  %v334 = vadd.f32 0.0, %v333
  %v335 = vpop.f32.mrb[0].mxu0
  %336 = vmatprep.mubr.bf16.mxu0 0
  %337 = vmatmul.mubr.bf16.gmra.mrb[0].mxu0 %v193
  %v338 = vpop.f32.mrb[0].mxu0
  %v339 = vadd.f32 0.0, %v338
  %v340 = vpop.f32.mrb[0].mxu0
  %v341 = vpop.f32.mrb[0].mxu0
  %v342 = vadd.f32 0.0, %v341
  %v343 = vpop.f32.mrb[0].mxu0
  %344 = vmatprep.mubr.bf16.mxu0 0
  %345 = vmatmul.mubr.bf16.gmra.mrb[0].mxu0 %v194
  %v346 = vpop.f32.mrb[0].mxu0
  %v347 = vadd.f32 0.0, %v346
  %v348 = vpop.f32.mrb[0].mxu0
  %v349 = vpop.f32.mrb[0].mxu0
  %v350 = vadd.f32 0.0, %v349
  %v351 = vpop.f32.mrb[0].mxu0
  %352 = vmatprep.mubr.bf16.mxu0 0
  %353 = vmatmul.mubr.bf16.gmra.mrb[0].mxu0 %v195
  %v354 = vpop.f32.mrb[0].mxu0
  %v355 = vadd.f32 0.0, %v354
  %v356 = vpop.f32.mrb[0].mxu0
  %v357 = vpop.f32.mrb[0].mxu0
  %v358 = vadd.f32 0.0, %v357
  %v359 = vpop.f32.mrb[0].mxu0
  %360 = vmatprep.mubr.bf16.mxu0 0
  %361 = vmatmul.mubr.bf16.gmra.mrb[0].mxu0 %v196
  %v362 = vpop.f32.mrb[0].mxu0
  %v363 = vadd.f32 0.0, %v362
  %v364 = vpop.f32.mrb[0].mxu0
  %v365 = vpop.f32.mrb[0].mxu0
  %v366 = vadd.f32 0.0, %v365
  %v367 = vpop.f32.mrb[0].mxu0
  %368 = vmatprep.mubr.bf16.mxu0 0
  %369 = vmatmul.mubr.bf16.gmra.mrb[0].mxu0 %v197
  %v370 = vpop.f32.mrb[0].mxu0
  %v371 = vadd.f32 0.0, %v370
  %v372 = vpop.f32.mrb[0].mxu0
  %v373 = vpop.f32.mrb[0].mxu0
  %v374 = vadd.f32 0.0, %v373
  %v375 = vpop.f32.mrb[0].mxu0
  %376 = vmatprep.mubr.bf16.mxu0 0
  %377 = vmatmul.mubr.bf16.gmra.mrb[0].mxu0 %v198
  %v378 = vpop.f32.mrb[0].mxu0
  %v379 = vadd.f32 0.0, %v378
  %v380 = vpop.f32.mrb[0].mxu0
  %v381 = vpop.f32.mrb[0].mxu0
  %v382 = vadd.f32 0.0, %v381
  %v383 = vpop.f32.mrb[0].mxu0
  %384 = vdwg.mxu0
  %v401 = vunpack.c.l.b16 %v150
  %v402 = vunpack.c.l.b16 %v151
  %v403 = vunpack.c.l.b16 %v152
  %v404 = vunpack.c.l.b16 %v153
  %v405 = vunpack.c.l.b16 %v154
  %v406 = vunpack.c.l.b16 %v155
  %v407 = vunpack.c.l.b16 %v156
  %v408 = vunpack.c.l.b16 %v157
  %v409 = vunpack.c.l.b16 %v158
  %v410 = vunpack.c.l.b16 %v159
  %v411 = vunpack.c.l.b16 %v160
  %v412 = vunpack.c.l.b16 %v161
  %v413 = vunpack.c.l.b16 %v162
  %v414 = vunpack.c.l.b16 %v163
  %v415 = vunpack.c.l.b16 %v164
  %v416 = vunpack.c.l.b16 %v165
  %v417 = vpack.c.b16 %v402, %v401
  %v418 = vpack.c.b16 %v404, %v403
  %v419 = vpack.c.b16 %v406, %v405
  %v420 = vpack.c.b16 %v408, %v407
  %v421 = vpack.c.b16 %v410, %v409
  %v422 = vpack.c.b16 %v412, %v411
  %v423 = vpack.c.b16 %v414, %v413
  %v424 = vpack.c.b16 %v416, %v415
  %433 = vmatprep.subr.bf16.mxu0 0
  %434 = vmatpush1.bf16.msra.mxu0 %v417
  %435 = vmatprep.subr.bf16.mxu0 0
  %436 = vmatpush1.bf16.msra.mxu0 %v418
  %437 = vmatprep.subr.bf16.mxu0 0
  %438 = vmatpush1.bf16.msra.mxu0 %v419
  %439 = vmatprep.subr.bf16.mxu0 0
  %440 = vmatpush1.bf16.msra.mxu0 %v420
  %441 = vmatprep.subr.bf16.mxu0 0
  %442 = vmatpush1.bf16.msra.mxu0 %v421
  %443 = vmatprep.subr.bf16.mxu0 0
  %444 = vmatpush1.bf16.msra.mxu0 %v422
  %445 = vmatprep.subr.bf16.mxu0 0
  %446 = vmatpush1.bf16.msra.mxu0 %v423
  %447 = vmatprep.subr.bf16.mxu0 0
  %448 = vmatpush1.bf16.msra.mxu0 %v424
  %449 = vmatprep.subr.bf16.mxu0 0
  %450 = vmatpush1.bf16.msra.mxu0 0
  %451 = vmatprep.subr.bf16.mxu0 0
  %452 = vmatpush1.bf16.msra.mxu0 0
  %453 = vmatprep.subr.bf16.mxu0 0
  %454 = vmatpush1.bf16.msra.mxu0 0
  %455 = vmatprep.subr.bf16.mxu0 0
  %456 = vmatpush1.bf16.msra.mxu0 0
  %457 = vmatprep.subr.bf16.mxu0 0
  %458 = vmatpush1.bf16.msra.mxu0 0
  %459 = vmatprep.subr.bf16.mxu0 0
  %460 = vmatpush1.bf16.msra.mxu0 0
  %461 = vmatprep.subr.bf16.mxu0 0
  %462 = vmatpush1.bf16.msra.mxu0 0
  %463 = vmatprep.subr.bf16.mxu0 0
  %464 = vmatpush1.bf16.msra.mxu0 0
  %465 = vmatprep.mubr.bf16.mxu0 0
  %466 = vmatmul.mubr.bf16.gmra.mrb[0].mxu0 %v139
  %v467 = vpop.f32.mrb[0].mxu0
  %v468 = vadd.f32 %v299, %v467
  %v469 = vpop.f32.mrb[0].mxu0
  %v470 = vpop.f32.mrb[0].mxu0
  %v471 = vadd.f32 %v302, %v470
  %v472 = vpop.f32.mrb[0].mxu0
  %473 = vmatprep.mubr.bf16.mxu0 0
  %474 = vmatmul.mubr.bf16.gmra.mrb[0].mxu0 %v140
  %v475 = vpop.f32.mrb[0].mxu0
  %v476 = vadd.f32 %v307, %v475
  %v477 = vpop.f32.mrb[0].mxu0
  %v478 = vpop.f32.mrb[0].mxu0
  %v479 = vadd.f32 %v310, %v478
  %v480 = vpop.f32.mrb[0].mxu0
  %481 = vmatprep.mubr.bf16.mxu0 0
  %482 = vmatmul.mubr.bf16.gmra.mrb[0].mxu0 %v141
  %v483 = vpop.f32.mrb[0].mxu0
  %v484 = vadd.f32 %v315, %v483
  %v485 = vpop.f32.mrb[0].mxu0
  %v486 = vpop.f32.mrb[0].mxu0
  %v487 = vadd.f32 %v318, %v486
  %v488 = vpop.f32.mrb[0].mxu0
  %489 = vmatprep.mubr.bf16.mxu0 0
  %490 = vmatmul.mubr.bf16.gmra.mrb[0].mxu0 %v142
  %v491 = vpop.f32.mrb[0].mxu0
  %v492 = vadd.f32 %v323, %v491
  %v493 = vpop.f32.mrb[0].mxu0
  %v494 = vpop.f32.mrb[0].mxu0
  %v495 = vadd.f32 %v326, %v494
  %v496 = vpop.f32.mrb[0].mxu0
  %497 = vmatprep.mubr.bf16.mxu0 0
  %498 = vmatmul.mubr.bf16.gmra.mrb[0].mxu0 %v143
  %v499 = vpop.f32.mrb[0].mxu0
  %v500 = vadd.f32 %v331, %v499
  %v501 = vpop.f32.mrb[0].mxu0
  %v502 = vpop.f32.mrb[0].mxu0
  %v503 = vadd.f32 %v334, %v502
  %v504 = vpop.f32.mrb[0].mxu0
  %505 = vmatprep.mubr.bf16.mxu0 0
  %506 = vmatmul.mubr.bf16.gmra.mrb[0].mxu0 %v144
  %v507 = vpop.f32.mrb[0].mxu0
  %v508 = vadd.f32 %v339, %v507
  %v509 = vpop.f32.mrb[0].mxu0
  %v510 = vpop.f32.mrb[0].mxu0
  %v511 = vadd.f32 %v342, %v510
  %v512 = vpop.f32.mrb[0].mxu0
  %513 = vmatprep.mubr.bf16.mxu0 0
  %514 = vmatmul.mubr.bf16.gmra.mrb[0].mxu0 %v145
  %v515 = vpop.f32.mrb[0].mxu0
  %v516 = vadd.f32 %v347, %v515
  %v517 = vpop.f32.mrb[0].mxu0
  %v518 = vpop.f32.mrb[0].mxu0
  %v519 = vadd.f32 %v350, %v518
  %v520 = vpop.f32.mrb[0].mxu0
  %521 = vmatprep.mubr.bf16.mxu0 0
  %522 = vmatmul.mubr.bf16.gmra.mrb[0].mxu0 %v146
  %v523 = vpop.f32.mrb[0].mxu0
  %v524 = vadd.f32 %v355, %v523
  %v525 = vpop.f32.mrb[0].mxu0
  %v526 = vpop.f32.mrb[0].mxu0
  %v527 = vadd.f32 %v358, %v526
  %v528 = vpop.f32.mrb[0].mxu0
  %529 = vmatprep.mubr.bf16.mxu0 0
  %530 = vmatmul.mubr.bf16.gmra.mrb[0].mxu0 %v147
  %v531 = vpop.f32.mrb[0].mxu0
  %v532 = vadd.f32 %v363, %v531
  %v533 = vpop.f32.mrb[0].mxu0
  %v534 = vpop.f32.mrb[0].mxu0
  %v535 = vadd.f32 %v366, %v534
  %v536 = vpop.f32.mrb[0].mxu0
  %537 = vmatprep.mubr.bf16.mxu0 0
  %538 = vmatmul.mubr.bf16.gmra.mrb[0].mxu0 %v148
  %v539 = vpop.f32.mrb[0].mxu0
  %v540 = vadd.f32 %v371, %v539
  %v541 = vpop.f32.mrb[0].mxu0
  %v542 = vpop.f32.mrb[0].mxu0
  %v543 = vadd.f32 %v374, %v542
  %v544 = vpop.f32.mrb[0].mxu0
  %545 = vmatprep.mubr.bf16.mxu0 0
  %546 = vmatmul.mubr.bf16.gmra.mrb[0].mxu0 %v149
  %v547 = vpop.f32.mrb[0].mxu0
  %v548 = vadd.f32 %v379, %v547
  %v549 = vpop.f32.mrb[0].mxu0
  %v550 = vpop.f32.mrb[0].mxu0
  %v551 = vadd.f32 %v382, %v550
  %v552 = vpop.f32.mrb[0].mxu0
  %553 = vdwg.mxu0
  %v554 = vld [vmem:[#allocation2 + $0x9] sm:$0xff]
  %v555 = vld [vmem:[#allocation2 + $0x11] sm:$0xff]
  %v556 = vld [vmem:[#allocation2 + $0x19] sm:$0xff]
  %v557 = vld [vmem:[#allocation2 + $0x21] sm:$0xff]
  %v558 = vld [vmem:[#allocation2 + $0x29] sm:$0xff]
  %v559 = vld [vmem:[#allocation2 + $0x31] sm:$0xff]
  %v560 = vld [vmem:[#allocation2 + $0x39] sm:$0xff]
  %v561 = vld [vmem:[#allocation2 + $0x41] sm:$0xff]
  %v562 = vld [vmem:[#allocation2 + $0x49] sm:$0xff]
  %v563 = vld [vmem:[#allocation2 + $0x51] sm:$0xff]
  %v564 = vld [vmem:[#allocation2 + $0x59] sm:$0xff]
  %v565 = vld [vmem:[#allocation2 + $0x61] sm:$0xff]
  %v566 = vld [vmem:[#allocation2 + $0x69] sm:$0xff]
  %v567 = vld [vmem:[#allocation2 + $0x71] sm:$0xff]
  %v568 = vld [vmem:[#allocation2 + $0x79] sm:$0xff]
  %v569 = vld [vmem:[#allocation2 + $0x81] sm:$0xff]
  %v570 = vld [vmem:[#allocation2 + $0x89] sm:$0xff]
  %v571 = vld [vmem:[#allocation2 + $0x91] sm:$0xff]
  %v572 = vld [vmem:[#allocation2 + $0x99] sm:$0xff]
  %v573 = vld [vmem:[#allocation2 + $0xa1] sm:$0xff]
  %v574 = vld [vmem:[#allocation2 + $0xa9] sm:$0xff]
  %v575 = vld [vmem:[#allocation2 + $0xb1] sm:$0xff]
  %v576 = vpack.c.bf16 %v555, %v554
  %v577 = vpack.c.bf16 %v557, %v556
  %v578 = vpack.c.bf16 %v559, %v558
  %v579 = vpack.c.bf16 %v561, %v560
  %v580 = vpack.c.bf16 %v563, %v562
  %v581 = vpack.c.bf16 %v565, %v564
  %v582 = vpack.c.bf16 %v567, %v566
  %v583 = vpack.c.bf16 %v569, %v568
  %v584 = vpack.c.bf16 %v571, %v570
  %v585 = vpack.c.bf16 %v573, %v572
  %v586 = vpack.c.bf16 %v575, %v574
  %s587 = scalar_lea.vmem %s2, 128
  %v588 = vld [vmem:[%s587] sm:$0xf]
  %v589 = vld [vmem:[%s587 + $0x4] sm:$0xf]
  %v590 = vld [vmem:[%s587 + $0x8] sm:$0xf]
  %v591 = vld [vmem:[%s587 + $0xc] sm:$0xf]
  %v592 = vld [vmem:[%s587 + $0x10] sm:$0xf]
  %v593 = vld [vmem:[%s587 + $0x14] sm:$0xf]
  %v594 = vld [vmem:[%s587 + $0x18] sm:$0xf]
  %v595 = vld [vmem:[%s587 + $0x1c] sm:$0xf]
  %v596 = vld [vmem:[%s587 + $0x20] sm:$0xf]
  %v597 = vld [vmem:[%s587 + $0x24] sm:$0xf]
  %v598 = vld [vmem:[%s587 + $0x28] sm:$0xf]
  %v599 = vld [vmem:[%s587 + $0x2c] sm:$0xf]
  %v600 = vld [vmem:[%s587 + $0x30] sm:$0xf]
  %v601 = vld [vmem:[%s587 + $0x34] sm:$0xf]
  %v602 = vld [vmem:[%s587 + $0x38] sm:$0xf]
  %v603 = vld [vmem:[%s587 + $0x3c] sm:$0xf]
  %v620 = vunpack.c.l.b16 %v588
  %v621 = vunpack.c.l.b16 %v589
  %v622 = vunpack.c.l.b16 %v590
  %v623 = vunpack.c.l.b16 %v591
  %v624 = vunpack.c.l.b16 %v592
  %v625 = vunpack.c.l.b16 %v593
  %v626 = vunpack.c.l.b16 %v594
  %v627 = vunpack.c.l.b16 %v595
  %v628 = vunpack.c.l.b16 %v596
  %v629 = vunpack.c.l.b16 %v597
  %v630 = vunpack.c.l.b16 %v598
  %v631 = vunpack.c.l.b16 %v599
  %v632 = vunpack.c.l.b16 %v600
  %v633 = vunpack.c.l.b16 %v601
  %v634 = vunpack.c.l.b16 %v602
  %v635 = vunpack.c.l.b16 %v603
  %v636 = vpack.c.b16 %v621, %v620
  %v637 = vpack.c.b16 %v623, %v622
  %v638 = vpack.c.b16 %v625, %v624
  %v639 = vpack.c.b16 %v627, %v626
  %v640 = vpack.c.b16 %v629, %v628
  %v641 = vpack.c.b16 %v631, %v630
  %v642 = vpack.c.b16 %v633, %v632
  %v643 = vpack.c.b16 %v635, %v634
  %652 = vmatprep.subr.bf16.mxu0 0
  %653 = vmatpush1.bf16.msra.mxu0 %v636
  %654 = vmatprep.subr.bf16.mxu0 0
  %655 = vmatpush1.bf16.msra.mxu0 %v637
  %656 = vmatprep.subr.bf16.mxu0 0
  %657 = vmatpush1.bf16.msra.mxu0 %v638
  %658 = vmatprep.subr.bf16.mxu0 0
  %659 = vmatpush1.bf16.msra.mxu0 %v639
  %660 = vmatprep.subr.bf16.mxu0 0
  %661 = vmatpush1.bf16.msra.mxu0 %v640
  %662 = vmatprep.subr.bf16.mxu0 0
  %663 = vmatpush1.bf16.msra.mxu0 %v641
  %664 = vmatprep.subr.bf16.mxu0 0
  %665 = vmatpush1.bf16.msra.mxu0 %v642
  %666 = vmatprep.subr.bf16.mxu0 0
  %667 = vmatpush1.bf16.msra.mxu0 %v643
  %668 = vmatprep.subr.bf16.mxu0 0
  %669 = vmatpush1.bf16.msra.mxu0 0
  %670 = vmatprep.subr.bf16.mxu0 0
  %671 = vmatpush1.bf16.msra.mxu0 0
  %672 = vmatprep.subr.bf16.mxu0 0
  %673 = vmatpush1.bf16.msra.mxu0 0
  %674 = vmatprep.subr.bf16.mxu0 0
  %675 = vmatpush1.bf16.msra.mxu0 0
  %676 = vmatprep.subr.bf16.mxu0 0
  %677 = vmatpush1.bf16.msra.mxu0 0
  %678 = vmatprep.subr.bf16.mxu0 0
  %679 = vmatpush1.bf16.msra.mxu0 0
  %680 = vmatprep.subr.bf16.mxu0 0
  %681 = vmatpush1.bf16.msra.mxu0 0
  %682 = vmatprep.subr.bf16.mxu0 0
  %683 = vmatpush1.bf16.msra.mxu0 0
  %684 = vmatprep.mubr.bf16.mxu0 0
  %685 = vmatmul.mubr.bf16.gmra.mrb[0].mxu0 %v576
  %v686 = vpop.f32.mrb[0].mxu0
  %v687 = vadd.f32 0.0, %v686
  %v688 = vpop.f32.mrb[0].mxu0
  %v689 = vpop.f32.mrb[0].mxu0
  %v690 = vadd.f32 0.0, %v689
  %v691 = vpop.f32.mrb[0].mxu0
  %692 = vmatprep.mubr.bf16.mxu0 0
  %693 = vmatmul.mubr.bf16.gmra.mrb[0].mxu0 %v577
  %v694 = vpop.f32.mrb[0].mxu0
  %v695 = vadd.f32 0.0, %v694
  %v696 = vpop.f32.mrb[0].mxu0
  %v697 = vpop.f32.mrb[0].mxu0
  %v698 = vadd.f32 0.0, %v697
  %v699 = vpop.f32.mrb[0].mxu0
  %700 = vmatprep.mubr.bf16.mxu0 0
  %701 = vmatmul.mubr.bf16.gmra.mrb[0].mxu0 %v578
  %v702 = vpop.f32.mrb[0].mxu0
  %v703 = vadd.f32 0.0, %v702
  %v704 = vpop.f32.mrb[0].mxu0
  %v705 = vpop.f32.mrb[0].mxu0
  %v706 = vadd.f32 0.0, %v705
  %v707 = vpop.f32.mrb[0].mxu0
  %708 = vmatprep.mubr.bf16.mxu0 0
  %709 = vmatmul.mubr.bf16.gmra.mrb[0].mxu0 %v579
  %v710 = vpop.f32.mrb[0].mxu0
  %v711 = vadd.f32 0.0, %v710
  %v712 = vpop.f32.mrb[0].mxu0
  %v713 = vpop.f32.mrb[0].mxu0
  %v714 = vadd.f32 0.0, %v713
  %v715 = vpop.f32.mrb[0].mxu0
  %716 = vmatprep.mubr.bf16.mxu0 0
  %717 = vmatmul.mubr.bf16.gmra.mrb[0].mxu0 %v580
  %v718 = vpop.f32.mrb[0].mxu0
  %v719 = vadd.f32 0.0, %v718
  %v720 = vpop.f32.mrb[0].mxu0
  %v721 = vpop.f32.mrb[0].mxu0
  %v722 = vadd.f32 0.0, %v721
  %v723 = vpop.f32.mrb[0].mxu0
  %724 = vmatprep.mubr.bf16.mxu0 0
  %725 = vmatmul.mubr.bf16.gmra.mrb[0].mxu0 %v581
  %v726 = vpop.f32.mrb[0].mxu0
  %v727 = vadd.f32 0.0, %v726
  %v728 = vpop.f32.mrb[0].mxu0
  %v729 = vpop.f32.mrb[0].mxu0
  %v730 = vadd.f32 0.0, %v729
  %v731 = vpop.f32.mrb[0].mxu0
  %732 = vmatprep.mubr.bf16.mxu0 0
  %733 = vmatmul.mubr.bf16.gmra.mrb[0].mxu0 %v582
  %v734 = vpop.f32.mrb[0].mxu0
  %v735 = vadd.f32 0.0, %v734
  %v736 = vpop.f32.mrb[0].mxu0
  %v737 = vpop.f32.mrb[0].mxu0
  %v738 = vadd.f32 0.0, %v737
  %v739 = vpop.f32.mrb[0].mxu0
  %740 = vmatprep.mubr.bf16.mxu0 0
  %741 = vmatmul.mubr.bf16.gmra.mrb[0].mxu0 %v583
  %v742 = vpop.f32.mrb[0].mxu0
  %v743 = vadd.f32 0.0, %v742
  %v744 = vpop.f32.mrb[0].mxu0
  %v745 = vpop.f32.mrb[0].mxu0
  %v746 = vadd.f32 0.0, %v745
  %v747 = vpop.f32.mrb[0].mxu0
  %748 = vmatprep.mubr.bf16.mxu0 0
  %749 = vmatmul.mubr.bf16.gmra.mrb[0].mxu0 %v584
  %v750 = vpop.f32.mrb[0].mxu0
  %v751 = vadd.f32 0.0, %v750
  %v752 = vpop.f32.mrb[0].mxu0
  %v753 = vpop.f32.mrb[0].mxu0
  %v754 = vadd.f32 0.0, %v753
  %v755 = vpop.f32.mrb[0].mxu0
  %756 = vmatprep.mubr.bf16.mxu0 0
  %757 = vmatmul.mubr.bf16.gmra.mrb[0].mxu0 %v585
  %v758 = vpop.f32.mrb[0].mxu0
  %v759 = vadd.f32 0.0, %v758
  %v760 = vpop.f32.mrb[0].mxu0
  %v761 = vpop.f32.mrb[0].mxu0
  %v762 = vadd.f32 0.0, %v761
  %v763 = vpop.f32.mrb[0].mxu0
  %764 = vmatprep.mubr.bf16.mxu0 0
  %765 = vmatmul.mubr.bf16.gmra.mrb[0].mxu0 %v586
  %v766 = vpop.f32.mrb[0].mxu0
  %v767 = vadd.f32 0.0, %v766
  %v768 = vpop.f32.mrb[0].mxu0
  %v769 = vpop.f32.mrb[0].mxu0
  %v770 = vadd.f32 0.0, %v769
  %v771 = vpop.f32.mrb[0].mxu0
  %772 = vdwg.mxu0
  %v773 = vadd.f32 %v468, %v687
  %v774 = vadd.f32 %v471, %v690
  %v775 = vadd.f32 %v476, %v695
  %v776 = vadd.f32 %v479, %v698
  %v777 = vadd.f32 %v484, %v703
  %v778 = vadd.f32 %v487, %v706
  %v779 = vadd.f32 %v492, %v711
  %v780 = vadd.f32 %v495, %v714
  %v781 = vadd.f32 %v500, %v719
  %v782 = vadd.f32 %v503, %v722
  %v783 = vadd.f32 %v508, %v727
  %v784 = vadd.f32 %v511, %v730
  %v785 = vadd.f32 %v516, %v735
  %v786 = vadd.f32 %v519, %v738
  %v787 = vadd.f32 %v524, %v743
  %v788 = vadd.f32 %v527, %v746
  %v789 = vadd.f32 %v532, %v751
  %v790 = vadd.f32 %v535, %v754
  %v791 = vadd.f32 %v540, %v759
  %v792 = vadd.f32 %v543, %v762
  %v793 = vadd.f32 %v548, %v767
  %v794 = vadd.f32 %v551, %v770
  %v795 = vld [vmem:[#allocation2 + $0xa] sm:$0xff]
  %v796 = vld [vmem:[#allocation2 + $0x12] sm:$0xff]
  %v797 = vld [vmem:[#allocation2 + $0x1a] sm:$0xff]
  %v798 = vld [vmem:[#allocation2 + $0x22] sm:$0xff]
  %v799 = vld [vmem:[#allocation2 + $0x2a] sm:$0xff]
  %v800 = vld [vmem:[#allocation2 + $0x32] sm:$0xff]
  %v801 = vld [vmem:[#allocation2 + $0x3a] sm:$0xff]
  %v802 = vld [vmem:[#allocation2 + $0x42] sm:$0xff]
  %v803 = vld [vmem:[#allocation2 + $0x4a] sm:$0xff]
  %v804 = vld [vmem:[#allocation2 + $0x52] sm:$0xff]
  %v805 = vld [vmem:[#allocation2 + $0x5a] sm:$0xff]
  %v806 = vld [vmem:[#allocation2 + $0x62] sm:$0xff]
  %v807 = vld [vmem:[#allocation2 + $0x6a] sm:$0xff]
  %v808 = vld [vmem:[#allocation2 + $0x72] sm:$0xff]
  %v809 = vld [vmem:[#allocation2 + $0x7a] sm:$0xff]
  %v810 = vld [vmem:[#allocation2 + $0x82] sm:$0xff]
  %v811 = vld [vmem:[#allocation2 + $0x8a] sm:$0xff]
  %v812 = vld [vmem:[#allocation2 + $0x92] sm:$0xff]
  %v813 = vld [vmem:[#allocation2 + $0x9a] sm:$0xff]
  %v814 = vld [vmem:[#allocation2 + $0xa2] sm:$0xff]
  %v815 = vld [vmem:[#allocation2 + $0xaa] sm:$0xff]
  %v816 = vld [vmem:[#allocation2 + $0xb2] sm:$0xff]
  %v817 = vpack.c.bf16 %v796, %v795
  %v818 = vpack.c.bf16 %v798, %v797
  %v819 = vpack.c.bf16 %v800, %v799
  %v820 = vpack.c.bf16 %v802, %v801
  %v821 = vpack.c.bf16 %v804, %v803
  %v822 = vpack.c.bf16 %v806, %v805
  %v823 = vpack.c.bf16 %v808, %v807
  %v824 = vpack.c.bf16 %v810, %v809
  %v825 = vpack.c.bf16 %v812, %v811
  %v826 = vpack.c.bf16 %v814, %v813
  %v827 = vpack.c.bf16 %v816, %v815
  %s828 = scalar_lea.vmem %s2, 192
  %v829 = vld [vmem:[%s828] sm:$0xf]
  %v830 = vld [vmem:[%s828 + $0x4] sm:$0xf]
  %v831 = vld [vmem:[%s828 + $0x8] sm:$0xf]
  %v832 = vld [vmem:[%s828 + $0xc] sm:$0xf]
  %v833 = vld [vmem:[%s828 + $0x10] sm:$0xf]
  %v834 = vld [vmem:[%s828 + $0x14] sm:$0xf]
  %v835 = vld [vmem:[%s828 + $0x18] sm:$0xf]
  %v836 = vld [vmem:[%s828 + $0x1c] sm:$0xf]
  %v837 = vld [vmem:[%s828 + $0x20] sm:$0xf]
  %v838 = vld [vmem:[%s828 + $0x24] sm:$0xf]
  %v839 = vld [vmem:[%s828 + $0x28] sm:$0xf]
  %v840 = vld [vmem:[%s828 + $0x2c] sm:$0xf]
  %v841 = vld [vmem:[%s828 + $0x30] sm:$0xf]
  %v842 = vld [vmem:[%s828 + $0x34] sm:$0xf]
  %v843 = vld [vmem:[%s828 + $0x38] sm:$0xf]
  %v844 = vld [vmem:[%s828 + $0x3c] sm:$0xf]
  %v861 = vunpack.c.l.b16 %v829
  %v862 = vunpack.c.l.b16 %v830
  %v863 = vunpack.c.l.b16 %v831
  %v864 = vunpack.c.l.b16 %v832
  %v865 = vunpack.c.l.b16 %v833
  %v866 = vunpack.c.l.b16 %v834
  %v867 = vunpack.c.l.b16 %v835
  %v868 = vunpack.c.l.b16 %v836
  %v869 = vunpack.c.l.b16 %v837
  %v870 = vunpack.c.l.b16 %v838
  %v871 = vunpack.c.l.b16 %v839
  %v872 = vunpack.c.l.b16 %v840
  %v873 = vunpack.c.l.b16 %v841
  %v874 = vunpack.c.l.b16 %v842
  %v875 = vunpack.c.l.b16 %v843
  %v876 = vunpack.c.l.b16 %v844
  %v877 = vpack.c.b16 %v862, %v861
  %v878 = vpack.c.b16 %v864, %v863
  %v879 = vpack.c.b16 %v866, %v865
  %v880 = vpack.c.b16 %v868, %v867
  %v881 = vpack.c.b16 %v870, %v869
  %v882 = vpack.c.b16 %v872, %v871
  %v883 = vpack.c.b16 %v874, %v873
  %v884 = vpack.c.b16 %v876, %v875
  %893 = vmatprep.subr.bf16.mxu0 0
  %894 = vmatpush1.bf16.msra.mxu0 %v877
  %895 = vmatprep.subr.bf16.mxu0 0
  %896 = vmatpush1.bf16.msra.mxu0 %v878
  %897 = vmatprep.subr.bf16.mxu0 0
  %898 = vmatpush1.bf16.msra.mxu0 %v879
  %899 = vmatprep.subr.bf16.mxu0 0
  %900 = vmatpush1.bf16.msra.mxu0 %v880
  %901 = vmatprep.subr.bf16.mxu0 0
  %902 = vmatpush1.bf16.msra.mxu0 %v881
  %903 = vmatprep.subr.bf16.mxu0 0
  %904 = vmatpush1.bf16.msra.mxu0 %v882
  %905 = vmatprep.subr.bf16.mxu0 0
  %906 = vmatpush1.bf16.msra.mxu0 %v883
  %907 = vmatprep.subr.bf16.mxu0 0
  %908 = vmatpush1.bf16.msra.mxu0 %v884
  %909 = vmatprep.subr.bf16.mxu0 0
  %910 = vmatpush1.bf16.msra.mxu0 0
  %911 = vmatprep.subr.bf16.mxu0 0
  %912 = vmatpush1.bf16.msra.mxu0 0
  %913 = vmatprep.subr.bf16.mxu0 0
  %914 = vmatpush1.bf16.msra.mxu0 0
  %915 = vmatprep.subr.bf16.mxu0 0
  %916 = vmatpush1.bf16.msra.mxu0 0
  %917 = vmatprep.subr.bf16.mxu0 0
  %918 = vmatpush1.bf16.msra.mxu0 0
  %919 = vmatprep.subr.bf16.mxu0 0
  %920 = vmatpush1.bf16.msra.mxu0 0
  %921 = vmatprep.subr.bf16.mxu0 0
  %922 = vmatpush1.bf16.msra.mxu0 0
  %923 = vmatprep.subr.bf16.mxu0 0
  %924 = vmatpush1.bf16.msra.mxu0 0
  %925 = vmatprep.mubr.bf16.mxu0 0
  %926 = vmatmul.mubr.bf16.gmra.mrb[0].mxu0 %v817
  %v927 = vpop.f32.mrb[0].mxu0
  %v928 = vadd.f32 0.0, %v927
  %v929 = vpop.f32.mrb[0].mxu0
  %v930 = vpop.f32.mrb[0].mxu0
  %v931 = vadd.f32 0.0, %v930
  %v932 = vpop.f32.mrb[0].mxu0
  %933 = vmatprep.mubr.bf16.mxu0 0
  %934 = vmatmul.mubr.bf16.gmra.mrb[0].mxu0 %v818
  %v935 = vpop.f32.mrb[0].mxu0
  %v936 = vadd.f32 0.0, %v935
  %v937 = vpop.f32.mrb[0].mxu0
  %v938 = vpop.f32.mrb[0].mxu0
  %v939 = vadd.f32 0.0, %v938
  %v940 = vpop.f32.mrb[0].mxu0
  %941 = vmatprep.mubr.bf16.mxu0 0
  %942 = vmatmul.mubr.bf16.gmra.mrb[0].mxu0 %v819
  %v943 = vpop.f32.mrb[0].mxu0
  %v944 = vadd.f32 0.0, %v943
  %v945 = vpop.f32.mrb[0].mxu0
  %v946 = vpop.f32.mrb[0].mxu0
  %v947 = vadd.f32 0.0, %v946
  %v948 = vpop.f32.mrb[0].mxu0
  %949 = vmatprep.mubr.bf16.mxu0 0
  %950 = vmatmul.mubr.bf16.gmra.mrb[0].mxu0 %v820
  %v951 = vpop.f32.mrb[0].mxu0
  %v952 = vadd.f32 0.0, %v951
  %v953 = vpop.f32.mrb[0].mxu0
  %v954 = vpop.f32.mrb[0].mxu0
  %v955 = vadd.f32 0.0, %v954
  %v956 = vpop.f32.mrb[0].mxu0
  %957 = vmatprep.mubr.bf16.mxu0 0
  %958 = vmatmul.mubr.bf16.gmra.mrb[0].mxu0 %v821
  %v959 = vpop.f32.mrb[0].mxu0
  %v960 = vadd.f32 0.0, %v959
  %v961 = vpop.f32.mrb[0].mxu0
  %v962 = vpop.f32.mrb[0].mxu0
  %v963 = vadd.f32 0.0, %v962
  %v964 = vpop.f32.mrb[0].mxu0
  %965 = vmatprep.mubr.bf16.mxu0 0
  %966 = vmatmul.mubr.bf16.gmra.mrb[0].mxu0 %v822
  %v967 = vpop.f32.mrb[0].mxu0
  %v968 = vadd.f32 0.0, %v967
  %v969 = vpop.f32.mrb[0].mxu0
  %v970 = vpop.f32.mrb[0].mxu0
  %v971 = vadd.f32 0.0, %v970
  %v972 = vpop.f32.mrb[0].mxu0
  %973 = vmatprep.mubr.bf16.mxu0 0
  %974 = vmatmul.mubr.bf16.gmra.mrb[0].mxu0 %v823
  %v975 = vpop.f32.mrb[0].mxu0
  %v976 = vadd.f32 0.0, %v975
  %v977 = vpop.f32.mrb[0].mxu0
  %v978 = vpop.f32.mrb[0].mxu0
  %v979 = vadd.f32 0.0, %v978
  %v980 = vpop.f32.mrb[0].mxu0
  %981 = vmatprep.mubr.bf16.mxu0 0
  %982 = vmatmul.mubr.bf16.gmra.mrb[0].mxu0 %v824
  %v983 = vpop.f32.mrb[0].mxu0
  %v984 = vadd.f32 0.0, %v983
  %v985 = vpop.f32.mrb[0].mxu0
  %v986 = vpop.f32.mrb[0].mxu0
  %v987 = vadd.f32 0.0, %v986
  %v988 = vpop.f32.mrb[0].mxu0
  %989 = vmatprep.mubr.bf16.mxu0 0
  %990 = vmatmul.mubr.bf16.gmra.mrb[0].mxu0 %v825
  %v991 = vpop.f32.mrb[0].mxu0
  %v992 = vadd.f32 0.0, %v991
  %v993 = vpop.f32.mrb[0].mxu0
  %v994 = vpop.f32.mrb[0].mxu0
  %v995 = vadd.f32 0.0, %v994
  %v996 = vpop.f32.mrb[0].mxu0
  %997 = vmatprep.mubr.bf16.mxu0 0
  %998 = vmatmul.mubr.bf16.gmra.mrb[0].mxu0 %v826
  %v999 = vpop.f32.mrb[0].mxu0
  %v1000 = vadd.f32 0.0, %v999
  %v1001 = vpop.f32.mrb[0].mxu0
  %v1002 = vpop.f32.mrb[0].mxu0
  %v1003 = vadd.f32 0.0, %v1002
  %v1004 = vpop.f32.mrb[0].mxu0
  %1005 = vmatprep.mubr.bf16.mxu0 0
  %1006 = vmatmul.mubr.bf16.gmra.mrb[0].mxu0 %v827
  %v1007 = vpop.f32.mrb[0].mxu0
  %v1008 = vadd.f32 0.0, %v1007
  %v1009 = vpop.f32.mrb[0].mxu0
  %v1010 = vpop.f32.mrb[0].mxu0
  %v1011 = vadd.f32 0.0, %v1010
  %v1012 = vpop.f32.mrb[0].mxu0
  %1013 = vdwg.mxu0
  %v1014 = vadd.f32 %v773, %v928
  %v1015 = vadd.f32 %v774, %v931
  %v1016 = vadd.f32 %v775, %v936
  %v1017 = vadd.f32 %v776, %v939
  %v1018 = vadd.f32 %v777, %v944
  %v1019 = vadd.f32 %v778, %v947
  %v1020 = vadd.f32 %v779, %v952
  %v1021 = vadd.f32 %v780, %v955
  %v1022 = vadd.f32 %v781, %v960
  %v1023 = vadd.f32 %v782, %v963
  %v1024 = vadd.f32 %v783, %v968
  %v1025 = vadd.f32 %v784, %v971
  %v1026 = vadd.f32 %v785, %v976
  %v1027 = vadd.f32 %v786, %v979
  %v1028 = vadd.f32 %v787, %v984
  %v1029 = vadd.f32 %v788, %v987
  %v1030 = vadd.f32 %v789, %v992
  %v1031 = vadd.f32 %v790, %v995
  %v1032 = vadd.f32 %v791, %v1000
  %v1033 = vadd.f32 %v792, %v1003
  %v1034 = vadd.f32 %v793, %v1008
  %v1035 = vadd.f32 %v794, %v1011
  %v1036 = vld [vmem:[%s3] sm:$0x1]
  %v1038 = vlaneseq
  %v1039 = vshrl.u32 %v1038, 7
  %v1040 = vsub.s32 0, %v1039
  %v1041 = vrot.slane %v1036, %v1040
  %v1043 = vadd.f32 %v1014, %v1041
  %v1044 = vadd.f32 %v1015, %v1041
  %v1045 = vadd.f32 %v1016, %v1041
  %v1046 = vadd.f32 %v1017, %v1041
  %v1047 = vadd.f32 %v1018, %v1041
  %v1048 = vadd.f32 %v1019, %v1041
  %v1049 = vadd.f32 %v1020, %v1041
  %v1050 = vadd.f32 %v1021, %v1041
  %v1051 = vadd.f32 %v1022, %v1041
  %v1052 = vadd.f32 %v1023, %v1041
  %v1053 = vadd.f32 %v1024, %v1041
  %v1054 = vadd.f32 %v1025, %v1041
  %v1055 = vadd.f32 %v1026, %v1041
  %v1056 = vadd.f32 %v1027, %v1041
  %v1057 = vadd.f32 %v1028, %v1041
  %v1058 = vadd.f32 %v1029, %v1041
  %v1059 = vadd.f32 %v1030, %v1041
  %v1060 = vadd.f32 %v1031, %v1041
  %v1061 = vadd.f32 %v1032, %v1041
  %v1062 = vadd.f32 %v1033, %v1041
  %v1063 = vadd.f32 %v1034, %v1041
  %v1064 = vadd.f32 %v1035, %v1041
  %vm1065 = vcmp.gt.f32.partialorder %v1043, 0.0
  %vm1066 = vcmp.gt.f32.partialorder %v1044, 0.0
  %vm1067 = vcmp.gt.f32.partialorder %v1045, 0.0
  %vm1068 = vcmp.gt.f32.partialorder %v1046, 0.0
  %vm1069 = vcmp.gt.f32.partialorder %v1047, 0.0
  %vm1070 = vcmp.gt.f32.partialorder %v1048, 0.0
  %vm1071 = vcmp.gt.f32.partialorder %v1049, 0.0
  %vm1072 = vcmp.gt.f32.partialorder %v1050, 0.0
  %vm1073 = vcmp.gt.f32.partialorder %v1051, 0.0
  %vm1074 = vcmp.gt.f32.partialorder %v1052, 0.0
  %vm1075 = vcmp.gt.f32.partialorder %v1053, 0.0
  %vm1076 = vcmp.gt.f32.partialorder %v1054, 0.0
  %vm1077 = vcmp.gt.f32.partialorder %v1055, 0.0
  %vm1078 = vcmp.gt.f32.partialorder %v1056, 0.0
  %vm1079 = vcmp.gt.f32.partialorder %v1057, 0.0
  %vm1080 = vcmp.gt.f32.partialorder %v1058, 0.0
  %vm1081 = vcmp.gt.f32.partialorder %v1059, 0.0
  %vm1082 = vcmp.gt.f32.partialorder %v1060, 0.0
  %vm1083 = vcmp.gt.f32.partialorder %v1061, 0.0
  %vm1084 = vcmp.gt.f32.partialorder %v1062, 0.0
  %vm1085 = vcmp.gt.f32.partialorder %v1063, 0.0
  %vm1086 = vcmp.gt.f32.partialorder %v1064, 0.0
  %v1087 = vmul.f32 %v1043, 0.2
  %v1088 = vmul.f32 %v1044, 0.2
  %v1089 = vmul.f32 %v1045, 0.2
  %v1090 = vmul.f32 %v1046, 0.2
  %v1091 = vmul.f32 %v1047, 0.2
  %v1092 = vmul.f32 %v1048, 0.2
  %v1093 = vmul.f32 %v1049, 0.2
  %v1094 = vmul.f32 %v1050, 0.2
  %v1095 = vmul.f32 %v1051, 0.2
  %v1096 = vmul.f32 %v1052, 0.2
  %v1097 = vmul.f32 %v1053, 0.2
  %v1098 = vmul.f32 %v1054, 0.2
  %v1099 = vmul.f32 %v1055, 0.2
  %v1100 = vmul.f32 %v1056, 0.2
  %v1101 = vmul.f32 %v1057, 0.2
  %v1102 = vmul.f32 %v1058, 0.2
  %v1103 = vmul.f32 %v1059, 0.2
  %v1104 = vmul.f32 %v1060, 0.2
  %v1105 = vmul.f32 %v1061, 0.2
  %v1106 = vmul.f32 %v1062, 0.2
  %v1107 = vmul.f32 %v1063, 0.2
  %v1108 = vmul.f32 %v1064, 0.2
  %v1109 = vsel %vm1065, %v1043, %v1087
  %v1110 = vsel %vm1066, %v1044, %v1088
  %v1111 = vsel %vm1067, %v1045, %v1089
  %v1112 = vsel %vm1068, %v1046, %v1090
  %v1113 = vsel %vm1069, %v1047, %v1091
  %v1114 = vsel %vm1070, %v1048, %v1092
  %v1115 = vsel %vm1071, %v1049, %v1093
  %v1116 = vsel %vm1072, %v1050, %v1094
  %v1117 = vsel %vm1073, %v1051, %v1095
  %v1118 = vsel %vm1074, %v1052, %v1096
  %v1119 = vsel %vm1075, %v1053, %v1097
  %v1120 = vsel %vm1076, %v1054, %v1098
  %v1121 = vsel %vm1077, %v1055, %v1099
  %v1122 = vsel %vm1078, %v1056, %v1100
  %v1123 = vsel %vm1079, %v1057, %v1101
  %v1124 = vsel %vm1080, %v1058, %v1102
  %v1125 = vsel %vm1081, %v1059, %v1103
  %v1126 = vsel %vm1082, %v1060, %v1104
  %v1127 = vsel %vm1083, %v1061, %v1105
  %v1128 = vsel %vm1084, %v1062, %v1106
  %v1129 = vsel %vm1085, %v1063, %v1107
  %v1130 = vsel %vm1086, %v1064, %v1108
  %1131 = vst [vmem:[%s4] sm:$0xff] %v1109
  %1132 = vst [vmem:[%s4 + $0x8] sm:$0xff] %v1110
  %1133 = vst [vmem:[%s4 + $0x10] sm:$0xff] %v1111
  %1134 = vst [vmem:[%s4 + $0x18] sm:$0xff] %v1112
  %1135 = vst [vmem:[%s4 + $0x20] sm:$0xff] %v1113
  %1136 = vst [vmem:[%s4 + $0x28] sm:$0xff] %v1114
  %1137 = vst [vmem:[%s4 + $0x30] sm:$0xff] %v1115
  %1138 = vst [vmem:[%s4 + $0x38] sm:$0xff] %v1116
  %1139 = vst [vmem:[%s4 + $0x40] sm:$0xff] %v1117
  %1140 = vst [vmem:[%s4 + $0x48] sm:$0xff] %v1118
  %1141 = vst [vmem:[%s4 + $0x50] sm:$0xff] %v1119
  %1142 = vst [vmem:[%s4 + $0x58] sm:$0xff] %v1120
  %1143 = vst [vmem:[%s4 + $0x60] sm:$0xff] %v1121
  %1144 = vst [vmem:[%s4 + $0x68] sm:$0xff] %v1122
  %1145 = vst [vmem:[%s4 + $0x70] sm:$0xff] %v1123
  %1146 = vst [vmem:[%s4 + $0x78] sm:$0xff] %v1124
  %1147 = vst [vmem:[%s4 + $0x80] sm:$0xff] %v1125
  %1148 = vst [vmem:[%s4 + $0x88] sm:$0xff] %v1126
  %1149 = vst [vmem:[%s4 + $0x90] sm:$0xff] %v1127
  %1150 = vst [vmem:[%s4 + $0x98] sm:$0xff] %v1128
  %1151 = vst [vmem:[%s4 + $0xa0] sm:$0xff] %v1129
  %1152 = vst [vmem:[%s4 + $0xa8] sm:$0xff] %v1130
  // Predicated region
  $region18: #{conv_lrelu.1} parent=0 // pred_check
    _
  $region19: #{conv_lrelu.1} parent=0 // pred_check_branch
    %1154 = sbr.rel (0) target = $region21
  $region20: #{conv_lrelu.1} parent=0 // pred_region
    _
  $region21: #{conv_lrelu.1} parent=0 // pred_fallthru
    _
  // Predicated region
  $region22: #{conv_lrelu.1} parent=0 // pred_check
    _
  $region23: #{conv_lrelu.1} parent=0 // pred_check_branch
    %1156 = sbr.rel (0) target = $region25
  $region24: #{conv_lrelu.1} parent=0 // pred_region
    _
  $region25: #{conv_lrelu.1} parent=0 // pred_fallthru
    _

</llo_original>
